<compile_context>
chip_gen: v7x
topology: tpu7x:2x2x1
jax: 0.10.0
libtpu: 0.0.40
codegen_flags: <defaults>
</compile_context>

<pallas_src>
import functools

import jax
import jax.numpy as jnp
from jax import lax
from jax.experimental import pallas as pl
from jax.experimental.pallas import tpu as pltpu


_TB_MAX = 512                  # hard cap on batch-tile rows
_TK = 2048                     # K tile (lane dim) for the large-D path
_FULL_D_MAX = 8192             # up to this input_dim: whole rows per block, no K axis
_X_TILE_F32_BYTES = 4 << 20    # budget for the f32 view of one x tile (per buffer)


def _round_up(v, m):
    return (v + m - 1) // m * m


def _pick_batch_tile(batch, f32_row_bytes):
    """Near-even batch split whose f32 x-tile fits the VMEM budget.

    Returned tile is a multiple of 8 (sublane rule) unless it covers the whole
    batch (block dim == full array dim is always legal)."""
    cap = _X_TILE_F32_BYTES // max(f32_row_bytes, 1)
    cap = max(8, min(_TB_MAX, (cap // 8) * 8))
    n_tiles = pl.cdiv(batch, cap)
    if n_tiles == 1:
        if batch >= 256:
            n_tiles = 2        # keep both v7x TensorCores streaming; ~free on v5e/v6e
        else:
            return batch       # single block covering the full batch dim
    return min(_round_up(pl.cdiv(batch, n_tiles), 8), batch)


# --------------------------------------------------------------------------
# Kernels
# --------------------------------------------------------------------------
def _logreg_kernel_fullk(x_ref, wt_ref, b_ref, o_ref):
    # x_ref : (TB, D)  original dtype (streamed per batch tile)
    # wt_ref: (D,  C)  float32, W^T, VMEM-resident across the whole grid
    # b_ref : (1,  C)  float32, resident
    # o_ref : (TB, C)  float32
    x = x_ref[...].astype(jnp.float32)                 # x.float(), on-chip
    o_ref[...] = (
        jnp.dot(x, wt_ref[...], preferred_element_type=jnp.float32)
        + b_ref[...]
    )


def _logreg_kernel_ktiled(x_ref, wt_ref, b_ref, o_ref, *, d_total, tk):
    # grid = (batch tiles, K tiles); K innermost.  o_ref block index is
    # constant across K -> resident accumulator (no scratch needed).
    k = pl.program_id(1)
    nk = pl.num_programs(1)

    @pl.when(k == 0)
    def _init():
        o_ref[...] = jnp.zeros_like(o_ref)

    x = x_ref[...]
    wt = wt_ref[...]
    if d_total % tk != 0:
        # Ragged K tail: OOB columns/rows of the last block hold unspecified
        # values; zero them on BOTH operands so their products are exactly 0.
        col = k * tk + lax.broadcasted_iota(jnp.int32, x.shape, dimension=1)
        x = jnp.where(col < d_total, x, jnp.zeros_like(x))
        row = k * tk + lax.broadcasted_iota(jnp.int32, wt.shape, dimension=0)
        wt = jnp.where(row < d_total, wt, jnp.zeros_like(wt))

    o_ref[...] += jnp.dot(x.astype(jnp.float32), wt,
                          preferred_element_type=jnp.float32)

    @pl.when(k == nk - 1)
    def _finish():
        o_ref[...] += b_ref[...]


# --------------------------------------------------------------------------
# Wrapper
# --------------------------------------------------------------------------
@functools.partial(jax.jit, static_argnames=("batch_tile", "k_tile"))
def logistic_regression_forward(x, weight, bias, *, batch_tile=None, k_tile=None):
    """Forward pass of LogisticRegressionModel.

    x      : (batch, input_dim), any dtype (cast to float32 like x.float())
    weight : (output_classes, input_dim)  -- PyTorch nn.Linear convention
    bias   : (output_classes,)
    returns: (batch, output_classes) float32
    """
    B, D = x.shape
    C, Dw = weight.shape
    assert D == Dw, "weight shape must be (output_classes, input_dim)"

    # One-time tiny transforms (C*D floats): f32 + transposed so the kernel
    # feeds the MXU its native (M,K)x(K,N) layout; stays resident in VMEM.
    wt = weight.astype(jnp.float32).T        # (D, C)
    b2 = bias.astype(jnp.float32).reshape(1, C)

    use_ktile = (k_tile is not None) or (D > _FULL_D_MAX)
    TK = (k_tile if k_tile is not None else _TK) if use_ktile else D
    TB = batch_tile if batch_tile is not None else _pick_batch_tile(B, 4 * TK)
    nB = pl.cdiv(B, TB)

    cost = pl.CostEstimate(
        flops=int(2 * B * D * C),
        transcendentals=0,
        bytes_accessed=int(B * D * x.dtype.itemsize + D * C * 4 + B * C * 4 + C * 4),
    )

    if not use_ktile:
        # Whole input_dim per block; weight fully resident; single grid axis.
        out = pl.pallas_call(
            _logreg_kernel_fullk,
            out_shape=jax.ShapeDtypeStruct((B, C), jnp.float32),
            grid_spec=pltpu.PrefetchScalarGridSpec(
                num_scalar_prefetch=0,
                grid=(nB,),
                in_specs=[
                    pl.BlockSpec((TB, D), lambda i: (i, 0)),   # x (streamed)
                    pl.BlockSpec((D, C), lambda i: (0, 0)),    # W^T (resident)
                    pl.BlockSpec((1, C), lambda i: (0, 0)),    # bias (resident)
                ],
                out_specs=pl.BlockSpec((TB, C), lambda i: (i, 0)),
            ),
            compiler_params=pltpu.CompilerParams(
                dimension_semantics=("parallel",)),
            cost_estimate=cost,
        )(x, wt, b2)
    else:
        nK = pl.cdiv(D, TK)
        kern = functools.partial(_logreg_kernel_ktiled, d_total=D, tk=TK)
        out = pl.pallas_call(
            kern,
            out_shape=jax.ShapeDtypeStruct((B, C), jnp.float32),
            grid_spec=pltpu.PrefetchScalarGridSpec(
                num_scalar_prefetch=0,
                grid=(nB, nK),
                in_specs=[
                    pl.BlockSpec((TB, TK), lambda i, k: (i, k)),  # x tile
                    pl.BlockSpec((TK, C), lambda i, k: (k, 0)),   # W^T K-slab
                    pl.BlockSpec((1, C), lambda i, k: (0, 0)),    # bias (resident)
                ],
                out_specs=pl.BlockSpec((TB, C), lambda i, k: (i, 0)),
            ),
            compiler_params=pltpu.CompilerParams(
                dimension_semantics=("parallel", "arbitrary")),
            cost_estimate=cost,
        )(x, wt, b2)

    return out


# --------------------------------------------------------------------------
# Reference + demo
# --------------------------------------------------------------------------
def _reference(x, weight, bias):
    return (jnp.dot(x.astype(jnp.float32), weight.astype(jnp.float32).T,
                    precision=lax.Precision.HIGHEST)
            + bias.astype(jnp.float32))


def _make_params(key, input_dim, output_classes):
    kw, kb = jax.random.split(key)
    bound = 1.0 / (input_dim ** 0.5)   # PyTorch nn.Linear default init range
    weight = jax.random.uniform(kw, (output_classes, input_dim),
                                minval=-bound, maxval=bound, dtype=jnp.float32)
    bias = jax.random.uniform(kb, (output_classes,),
                              minval=-bound, maxval=bound, dtype=jnp.float32)
    return weight, bias


if __name__ == "__main__":
    key = jax.random.PRNGKey(0)
    k1, k2, k3, k4 = jax.random.split(key, 4)

    # --- Test 1: small shapes consistent with the module (full-D path) ---
    B1, D1, C1 = 8, 32, 4
    w1, b1 = _make_params(k1, D1, C1)
    x1 = jax.random.normal(k2, (B1, D1), dtype=jnp.float32)

    out1 = jax.block_until_ready(logistic_regression_forward(x1, w1, b1))
    ref1 = _reference(x1, w1, b1)
    assert out1.shape == (B1, C1)
    assert jnp.allclose(out1, ref1, atol=1e-4, rtol=1e-4), "small-case mismatch"

    # --- Test 2: ragged multi-tile batch, bf16 features, weight resident ---
    B2, D2, C2 = 600, 2500, 10
    w2, b2 = _make_params(k3, D2, C2)
    x2 = jax.random.normal(k4, (B2, D2), dtype=jnp.bfloat16)

    out2 = jax.block_until_ready(logistic_regression_forward(x2, w2, b2))
    ref2 = _reference(x2, w2, b2)
    assert out2.shape == (B2, C2)
    assert jnp.allclose(out2, ref2, atol=2e-3, rtol=2e-3), "full-D path mismatch"

    # --- Test 3: force the K-tiled path with a ragged K tail (in-kernel mask) ---
    out3 = jax.block_until_ready(
        logistic_regression_forward(x2, w2, b2, batch_tile=256, k_tile=1024))
    assert out3.shape == (B2, C2)
    assert jnp.allclose(out3, ref2, atol=2e-3, rtol=2e-3), "K-tiled path mismatch"

    print("KERNEL_OK")
</pallas_src>

<mosaic_0001>
module attributes {stable_mosaic.version = 11 : i64} {
  func.func @_logreg_kernel_fullk(%arg0: i32, %arg1: memref<8x32xf32, #tpu.memory_space<vmem>>, %arg2: memref<32x4xf32, #tpu.memory_space<vmem>>, %arg3: memref<1x4xf32, #tpu.memory_space<vmem>>, %arg4: memref<8x4xf32, #tpu.memory_space<vmem>>) attributes {dimension_semantics = [#tpu.dimension_semantics<parallel>], iteration_bounds = array<i64: 1>, scalar_prefetch = 0 : i64, scratch_operands = 0 : i64, tpu.core_type = #tpu.core_type<tc>, window_params = [{transform_indices = @transform_0, window_bounds = array<i64: 8, 32>}, {pipeline_mode = #tpu.pipeline_mode<synchronous>, transform_indices = @transform_1, window_bounds = array<i64: 32, 4>}, {pipeline_mode = #tpu.pipeline_mode<synchronous>, transform_indices = @transform_2, window_bounds = array<i64: 1, 4>}, {transform_indices = @transform_3, window_bounds = array<i64: 8, 4>}]} {
    %c0 = arith.constant 0 : index
    %c0_0 = arith.constant 0 : index
    %0 = vector.load %arg1[%c0, %c0_0] : memref<8x32xf32, #tpu.memory_space<vmem>>, vector<8x32xf32>
    %c0_1 = arith.constant 0 : index
    %c0_2 = arith.constant 0 : index
    %1 = vector.load %arg2[%c0_1, %c0_2] : memref<32x4xf32, #tpu.memory_space<vmem>>, vector<32x4xf32>
    %cst = arith.constant dense<0.000000e+00> : vector<8x4xf32>
    %2 = tpu.matmul %0, %1, %cst {dimension_numbers = #tpu.dot_dimension_numbers<[1], [0], [0], [1], [0, 0, 1, 1], [], []>} : vector<8x32xf32>, vector<32x4xf32>, vector<8x4xf32> -> vector<8x4xf32>
    %c0_3 = arith.constant 0 : index
    %c0_4 = arith.constant 0 : index
    %3 = vector.load %arg3[%c0_3, %c0_4] : memref<1x4xf32, #tpu.memory_space<vmem>>, vector<1x4xf32>
    %4 = vector.broadcast %3 : vector<1x4xf32> to vector<8x4xf32>
    %5 = arith.addf %2, %4 : vector<8x4xf32>
    %c0_5 = arith.constant 0 : index
    %c0_6 = arith.constant 0 : index
    %6 = vector.load %arg4[%c0_5, %c0_6] : memref<8x4xf32, #tpu.memory_space<vmem>>, vector<8x4xf32>
    tpu.vector_store %arg4[%c0_5, %c0_6], %5 {strides = array<i32>} : memref<8x4xf32, #tpu.memory_space<vmem>>, vector<8x4xf32>,
    return
  }
  func.func @transform_0(%arg0: i32) -> (i32, i32) {
    %c0_i32 = arith.constant 0 : i32
    %c0_i32_0 = arith.constant 0 : i32
    return %arg0, %c0_i32 : i32, i32
  }
  func.func @transform_1(%arg0: i32) -> (i32, i32) {
    %c0_i32 = arith.constant 0 : i32
    %c0_i32_0 = arith.constant 0 : i32
    %c0_i32_1 = arith.constant 0 : i32
    return %c0_i32, %c0_i32_0 : i32, i32
  }
  func.func @transform_2(%arg0: i32) -> (i32, i32) {
    %c0_i32 = arith.constant 0 : i32
    %c0_i32_0 = arith.constant 0 : i32
    %c0_i32_1 = arith.constant 0 : i32
    return %c0_i32, %c0_i32_0 : i32, i32
  }
  func.func @transform_3(%arg0: i32) -> (i32, i32) {
    %c0_i32 = arith.constant 0 : i32
    %c0_i32_0 = arith.constant 0 : i32
    return %arg0, %c0_i32 : i32, i32
  }
}

</mosaic_0001>

<llo_original>
// kernel: logistic_regression_forward.1
$region0: #{logistic_regression_forward.1}
  #allocation0 [shape = 'u32[]', space=smem, size = 0x4, offset = 0x4, fixed_abs, tag = 'smem constant byte address 0x4 - core index']
  #allocation1 [shape = 'u32[144,128]{1,0:T(1,128)}', space=vmem, size = 0x12000, scoped, tag = 'internal scratch']
  %s0 = inlined_call_operand.vmem [shape: f32[8,32], index: 0, kind: input, shape index: {}]
  %s1 = inlined_call_operand.vmem [shape: f32[32,4], index: 1, kind: input, shape index: {}]
  %s2 = inlined_call_operand.vmem [shape: f32[1,4], index: 2, kind: input, shape index: {}]
  %s3 = inlined_call_operand.vmem [shape: f32[8,4], index: 3, kind: output, shape index: {}]
  %s4 = sld [smem:[#allocation0]]
  $region22: #{logistic_regression_forward.1} parent=0
    _
  %s6 = ssub.s32 1, %s4
  %s7 = scalar_select 0, %s6, %s4
  // Predicated region
  $region2: #{logistic_regression_forward.1} parent=0 // pred_check
    _
  $region3: #{logistic_regression_forward.1} parent=0 // pred_check_branch
    %9 = sbr.rel (0) target = $region5
  $region4: #{logistic_regression_forward.1} parent=0 // pred_region
    _
  $region5: #{logistic_regression_forward.1} parent=0 // pred_fallthru
    _
  // Predicated region
  $region6: #{logistic_regression_forward.1} parent=0 // pred_check
    _
  $region7: #{logistic_regression_forward.1} parent=0 // pred_check_branch
    %11 = sbr.rel (0) target = $region9
  $region8: #{logistic_regression_forward.1} parent=0 // pred_region
    _
  $region9: #{logistic_regression_forward.1} parent=0 // pred_fallthru
    _
  // Predicated region
  $region10: #{logistic_regression_forward.1} parent=0 // pred_check
    _
  $region11: #{logistic_regression_forward.1} parent=0 // pred_check_branch
    %13 = sbr.rel (0) target = $region13
  $region12: #{logistic_regression_forward.1} parent=0 // pred_region
    _
  $region13: #{logistic_regression_forward.1} parent=0 // pred_fallthru
    _
  %v14 = vld [vmem:[%s0] sm:$0xff]
  %v15 = vld [vmem:[%s1] sm:$0xff]
  %v16 = vld [vmem:[%s1 + $0x8] sm:$0xff]
  %v17 = vld [vmem:[%s1 + $0x10] sm:$0xff]
  %v18 = vld [vmem:[%s1 + $0x18] sm:$0xff]
  %v19 = vld [vmem:[%s2] sm:$0x1]
  %v21 = vlaneseq
  %v22 = vshrl.u32 %v21, 7
  %v23 = vsub.s32 0, %v22
  %v24 = vrot.slane %v19, %v23
  %vm26 = vcmask 261120
  %v28 = vsel %vm26, %v14, 0
  %30 = vmatprep.subr.mxu0 0.0
  %31 = vmatpush1.msra.mxu0 %v15
  %32 = vmatprep.subr.mxu0 0.0
  %33 = vmatpush1.msra.mxu0 %v16
  %34 = vmatprep.subr.mxu0 0.0
  %35 = vmatpush1.msra.mxu0 %v17
  %36 = vmatprep.subr.mxu0 0.0
  %37 = vmatpush1.msra.mxu0 %v18
  %38 = vmatprep.subr.mxu0 0.0
  %39 = vmatpush1.msra.mxu0 0.0
  %40 = vmatprep.subr.mxu0 0.0
  %41 = vmatpush1.msra.mxu0 0.0
  %42 = vmatprep.subr.mxu0 0.0
  %43 = vmatpush1.msra.mxu0 0.0
  %44 = vmatprep.subr.mxu0 0.0
  %45 = vmatpush1.msra.mxu0 0.0
  %46 = vmatprep.subr.mxu0 0.0
  %47 = vmatpush1.msra.mxu0 0.0
  %48 = vmatprep.subr.mxu0 0.0
  %49 = vmatpush1.msra.mxu0 0.0
  %50 = vmatprep.subr.mxu0 0.0
  %51 = vmatpush1.msra.mxu0 0.0
  %52 = vmatprep.subr.mxu0 0.0
  %53 = vmatpush1.msra.mxu0 0.0
  %54 = vmatprep.subr.mxu0 0.0
  %55 = vmatpush1.msra.mxu0 0.0
  %56 = vmatprep.subr.mxu0 0.0
  %57 = vmatpush1.msra.mxu0 0.0
  %58 = vmatprep.subr.mxu0 0.0
  %59 = vmatpush1.msra.mxu0 0.0
  %60 = vmatprep.subr.mxu0 0.0
  %61 = vmatpush1.msra.mxu0 0.0
  %62 = vmatprep.subr.mxu0 0.0
  %63 = vmatpush1.msra.mxu0 0.0
  %64 = vmatprep.subr.mxu0 0.0
  %65 = vmatpush1.msra.mxu0 0.0
  %66 = vmatprep.subr.mxu0 0.0
  %67 = vmatpush1.msra.mxu0 0.0
  %68 = vmatprep.subr.mxu0 0.0
  %69 = vmatpush1.msra.mxu0 0.0
  %70 = vmatprep.subr.mxu0 0.0
  %71 = vmatpush1.msra.mxu0 0.0
  %72 = vmatprep.subr.mxu0 0.0
  %73 = vmatpush1.msra.mxu0 0.0
  %74 = vmatprep.subr.mxu0 0.0
  %75 = vmatpush1.msra.mxu0 0.0
  %76 = vmatprep.subr.mxu0 0.0
  %77 = vmatpush1.msra.mxu0 0.0
  %78 = vmatprep.subr.mxu0 0.0
  %79 = vmatpush1.msra.mxu0 0.0
  %80 = vmatprep.subr.mxu0 0.0
  %81 = vmatpush1.msra.mxu0 0.0
  %82 = vmatprep.subr.mxu0 0.0
  %83 = vmatpush1.msra.mxu0 0.0
  %84 = vmatprep.subr.mxu0 0.0
  %85 = vmatpush1.msra.mxu0 0.0
  %86 = vmatprep.subr.mxu0 0.0
  %87 = vmatpush1.msra.mxu0 0.0
  %88 = vmatprep.subr.mxu0 0.0
  %89 = vmatpush1.msra.mxu0 0.0
  %90 = vmatprep.subr.mxu0 0.0
  %91 = vmatpush1.msra.mxu0 0.0
  %92 = vmatprep.subr.mxu0 0.0
  %93 = vmatpush1.msra.mxu0 0.0
  %94 = vmatprep.mubr.f32.mxu0 0.0
  %95 = vmatmul.mubr.f32.gmra.mrb[0].mxu0 %v28
  %v96 = vpop.f32.mrb[0].mxu0
  %v97 = vadd.f32 %v24, %v96
  %v98 = vpop.f32.mrb[0].mxu0
  %99 = vdwg.mxu0
  %vm100 = vcmask 31744
  %101 = vst.msk [vmem:[%s3] sm:$0xff] %vm100, %v97
  // Predicated region
  $region14: #{logistic_regression_forward.1} parent=0 // pred_check
    _
  $region15: #{logistic_regression_forward.1} parent=0 // pred_check_branch
    %103 = sbr.rel (0) target = $region17
  $region16: #{logistic_regression_forward.1} parent=0 // pred_region
    _
  $region17: #{logistic_regression_forward.1} parent=0 // pred_fallthru
    _
  // Predicated region
  $region18: #{logistic_regression_forward.1} parent=0 // pred_check
    _
  $region19: #{logistic_regression_forward.1} parent=0 // pred_check_branch
    %105 = sbr.rel (0) target = $region21
  $region20: #{logistic_regression_forward.1} parent=0 // pred_region
    _
  $region21: #{logistic_regression_forward.1} parent=0 // pred_fallthru
    _

</llo_original>
